<compile_context>
chip_gen: v7x
topology: tpu7x:2x2x1
jax: 0.10.0
libtpu: 0.0.40
codegen_flags: <defaults>
</compile_context>

<pallas_src>
import functools

import jax
import jax.numpy as jnp
from jax import lax
from jax.experimental import pallas as pl
from jax.experimental.pallas import tpu as pltpu


def _ane_rms_norm_kernel(x_ref, w_ref, o_ref, *, scaling_factor, use_maxval_path):
    # x_ref: (C, TL) original dtype; w_ref: (C, 1) f32 pre-scaled by sqrt(C)
    x = x_ref[...].astype(jnp.float32)
    w = w_ref[...]

    if use_maxval_path:
        # maxval = clamp(max(|x|, axis=C) / scaling_factor, min=2^-24) per lane
        maxval = jnp.max(jnp.abs(x), axis=0, keepdims=True) * jnp.float32(
            1.0 / scaling_factor)
        maxval = jnp.maximum(maxval, jnp.float32(2.0 ** (-24)))
        # EUP reciprocal (separate VLIW slot); its error cancels against rsqrt
        # of the scaled sum-of-squares below, so approx=True is safe.
        inv_max = pl.reciprocal(maxval, approx=True)     # (1, TL)
        xs = x * inv_max                                 # xscaled
    else:
        # Fast path: maxval/inv_max cancel algebraically -> x * rsqrt(sum x^2).
        xs = x

    sq_sum = jnp.sum(xs * xs, axis=0, keepdims=True)     # reduce over C (XLU)
    r = lax.rsqrt(sq_sum)                                # (1, TL)

    # out = rsqrt * sqrt(C) * xscaled * weight   (sqrt(C) folded into w)
    # Downcast fuses into the store -> single vst per vreg, orig-dtype HBM out.
    o_ref[...] = (xs * r * w).astype(o_ref.dtype)


def _tensorcores_per_chip() -> int:
    """Best-effort TensorCore count (v7x=2, v5e/v6e=1). Defaults to 1."""
    try:
        info = pltpu.get_tpu_info()
        for attr in ("num_cores", "core_count", "tensorcore_count"):
            v = getattr(info, attr, None)
            if v:
                return int(v)
    except Exception:
        pass
    return 1


def _vmem_tile_budget_bytes() -> int:
    """Conservative per-tile VMEM budget; shrinks if the chip reports less."""
    budget = 8 * 1024 * 1024
    try:
        cap = int(pltpu.get_tpu_info().vmem_capacity_bytes)
        budget = min(budget, max(2 * 1024 * 1024, cap // 8))
    except Exception:
        pass
    return budget


def _rmsnorm_native(x3, w2, *, scaling_factor=1.0, use_maxval_path=True):
    """x3: (B, C, L) any float dtype, w2: (C, 1) f32 (already * sqrt(C))."""
    B, C, L = x3.shape
    itemsize = jnp.dtype(x3.dtype).itemsize

    # Per output column (lane) VMEM footprint:
    #   double-buffered input tile  : 2 * C * itemsize
    #   double-buffered output tile : 2 * C * itemsize
    #   in-kernel f32 temporaries   : ~3 * C * 4  (x upcast, xs, pre-store prod)
    per_col_bytes = 4 * C * itemsize + 12 * C
    budget_bytes = _vmem_tile_budget_bytes()
    # Mem-bound plateau is reached around 512-1024 lanes; cap TL at 1024.
    max_tl = max(128, min(1024, (budget_bytes // per_col_bytes) // 128 * 128))

    TL = L if L <= max_tl else max_tl

    # Only on multi-TC chips (v7x): make sure there are >=2 grid steps so both
    # TensorCores get work. On single-TC v5e/v6e this would only add per-step
    # overhead, so skip it there.
    if _tensorcores_per_chip() >= 2:
        if B * ((L + TL - 1) // TL) < 2 and L >= 256:
            TL = ((((L + 1) // 2) + 127) // 128) * 128

    grid = (B, (L + TL - 1) // TL)

    cost = pl.CostEstimate(
        flops=8 * B * C * L,
        transcendentals=2 * B * L,
        bytes_accessed=2 * B * C * L * itemsize + C * 4,
    )

    kernel = functools.partial(_ane_rms_norm_kernel,
                               scaling_factor=scaling_factor,
                               use_maxval_path=use_maxval_path)
    return pl.pallas_call(
        kernel,
        out_shape=jax.ShapeDtypeStruct((B, C, L), x3.dtype),
        grid_spec=pltpu.PrefetchScalarGridSpec(
            num_scalar_prefetch=0,
            grid=grid,
            in_specs=[
                # batch dim squeezed; kernel sees (C, TL)
                pl.BlockSpec((None, C, TL), lambda b, l: (b, 0, l)),
                pl.BlockSpec((C, 1), lambda b, l: (0, 0)),
            ],
            out_specs=pl.BlockSpec((None, C, TL), lambda b, l: (b, 0, l)),
        ),
        compiler_params=pltpu.CompilerParams(
            dimension_semantics=("parallel", "parallel"),
            vmem_limit_bytes=32 * 1024 * 1024,
        ),
        cost_estimate=cost,
    )(x3, w2)


def _rmsnorm_xla(x, weight_scaled, *, scaling_factor=1.0, use_maxval_path=True):
    """Plain-XLA fallback for lane-sparse shapes (H*S < 128)."""
    xf = x.astype(jnp.float32)
    if use_maxval_path:
        maxval = jnp.max(jnp.abs(xf), axis=1, keepdims=True) / scaling_factor
        maxval = jnp.maximum(maxval, 2.0 ** (-24))
        xs = xf / maxval
    else:
        xs = xf
    sq = jnp.sum(xs * xs, axis=1, keepdims=True)
    w = weight_scaled.reshape(1, -1, 1, 1)
    return (lax.rsqrt(sq) * xs * w).astype(x.dtype)


def ane_rms_norm(x, weight, *, dim=1, w_num_unsqueezes=2, eps=1e-6,
                 scaling_factor=1.0, use_maxval_path=True):
    """JAX/Pallas equivalent of ANERMSNorm.forward.

    x: (B, C, H, S) array (any float dtype), normalized over dim=1.
    weight: (C,) array (nn.RMSNorm weight). Returns same shape/dtype as x.
    `eps` is accepted for interface parity but (like the PyTorch reference
    ane_rms_norm) is never used in the computation.
    `use_maxval_path=False` enables the algebraically-equivalent fast path
    (differs only when the 2^-24 clamp engages or sum(x^2) overflows f32).
    """
    assert dim == 1 and x.ndim == 4
    assert w_num_unsqueezes == 2  # weight broadcasts over trailing (H, S)
    B, C, H, S = x.shape
    L = H * S

    w_scaled = weight.astype(jnp.float32) * jnp.float32(C ** 0.5)

    if L < 128:
        # Lane-sparse (e.g. decode, S=1): masked partial stores would waste
        # ~128/L of the bandwidth; plain XLA is the better choice here.
        return _rmsnorm_xla(x, w_scaled, scaling_factor=scaling_factor,
                            use_maxval_path=use_maxval_path)

    # contiguous reshape only — no HBM transpose, no f32 copy of x
    x3 = x.reshape(B, C, L)
    w2 = w_scaled.reshape(C, 1)
    y3 = _rmsnorm_native(x3, w2, scaling_factor=scaling_factor,
                         use_maxval_path=use_maxval_path)
    return y3.reshape(B, C, H, S)


def _reference(x, weight, *, scaling_factor=1.0):
    # pure-JAX replica of the PyTorch ane_rms_norm for validation
    xf = x.astype(jnp.float32)
    maxval = jnp.max(jnp.abs(xf), axis=1, keepdims=True) / scaling_factor
    maxval = jnp.maximum(maxval, 2.0 ** (-24))
    xs = xf / maxval
    sq = jnp.sum(xs * xs, axis=1, keepdims=True)
    out = lax.rsqrt(sq) * (xf.shape[1] ** 0.5) * xs
    w = weight.astype(jnp.float32).reshape(1, -1, 1, 1)
    return (out * w).astype(x.dtype)


if __name__ == "__main__":
    key = jax.random.PRNGKey(0)
    kx, kw, kx2 = jax.random.split(key, 3)

    # Main kernel path: L = H*S = 128 (lane-dense), norm over C (dim=1).
    B, C, H, S = 2, 32, 8, 16
    x = jax.random.normal(kx, (B, C, H, S), dtype=jnp.float32)
    weight = 1.0 + 0.1 * jax.random.normal(kw, (C,), dtype=jnp.float32)

    # f32 path (ANE maxval parity path)
    y = jax.block_until_ready(ane_rms_norm(x, weight, dim=1,
                                           w_num_unsqueezes=2, eps=1e-6))
    y_ref = _reference(x, weight)
    assert y.shape == x.shape and y.dtype == x.dtype
    assert jnp.allclose(y, y_ref, atol=1e-4, rtol=1e-4)

    # fast path (maxval algebraically cancelled) — same result up to rounding
    y_fast = jax.block_until_ready(ane_rms_norm(x, weight,
                                                use_maxval_path=False))
    assert jnp.allclose(y_fast, y_ref, atol=1e-4, rtol=1e-4)

    # bf16 path exercises the in-kernel upcast and original-dtype I/O
    xb = x.astype(jnp.bfloat16)
    yb = jax.block_until_ready(ane_rms_norm(xb, weight))
    yb_ref = _reference(xb, weight)
    assert yb.shape == xb.shape and yb.dtype == jnp.bfloat16
    assert jnp.allclose(yb.astype(jnp.float32), yb_ref.astype(jnp.float32),
                        atol=2e-2, rtol=2e-2)

    # lane-sparse (decode-style) shape goes through the XLA fallback
    xs_small = jax.random.normal(kx2, (2, 4, 1, 8), dtype=jnp.float32)
    ws_small = jnp.ones((4,), dtype=jnp.float32)
    ys = jax.block_until_ready(ane_rms_norm(xs_small, ws_small))
    assert jnp.allclose(ys, _reference(xs_small, ws_small), atol=1e-5, rtol=1e-5)

    print("KERNEL_OK")
</pallas_src>

<mosaic_0001>
module attributes {stable_mosaic.version = 11 : i64} {
  func.func @_ane_rms_norm_kernel(%arg0: i32, %arg1: i32, %arg2: memref<1x32x128xf32, #tpu.memory_space<vmem>>, %arg3: memref<32x1xf32, #tpu.memory_space<vmem>>, %arg4: memref<1x32x128xf32, #tpu.memory_space<vmem>>) attributes {dimension_semantics = [#tpu.dimension_semantics<parallel>, #tpu.dimension_semantics<parallel>], iteration_bounds = array<i64: 2, 1>, scalar_prefetch = 0 : i64, scratch_operands = 0 : i64, tpu.core_type = #tpu.core_type<tc>, window_params = [{transform_indices = @transform_0, window_bounds = array<i64: 1, 32, 128>}, {pipeline_mode = #tpu.pipeline_mode<synchronous>, transform_indices = @transform_1, window_bounds = array<i64: 32, 1>}, {transform_indices = @transform_2, window_bounds = array<i64: 1, 32, 128>}]} {
    %c0 = arith.constant 0 : index
    %c0_0 = arith.constant 0 : index
    %c0_1 = arith.constant 0 : index
    %0 = vector.load %arg2[%c0, %c0_0, %c0_1] : memref<1x32x128xf32, #tpu.memory_space<vmem>>, vector<1x32x128xf32>
    %1 = vector.shape_cast %0 : vector<1x32x128xf32> to vector<32x128xf32>
    %c0_2 = arith.constant 0 : index
    %c0_3 = arith.constant 0 : index
    %2 = vector.load %arg3[%c0_2, %c0_3] : memref<32x1xf32, #tpu.memory_space<vmem>>, vector<32x1xf32>
    %3 = math.absf %1 : vector<32x128xf32>
    %cst = arith.constant dense<0xFF800000> : vector<128xf32>
    %4 = vector.multi_reduction <maximumf>, %3, %cst [0] : vector<32x128xf32> to vector<128xf32>
    %5 = vector.shape_cast %4 : vector<128xf32> to vector<1x128xf32>
    %cst_4 = arith.constant 1.000000e+00 : f32
    %6 = vector.broadcast %cst_4 : f32 to vector<1x128xf32>
    %7 = arith.mulf %5, %6 : vector<1x128xf32>
    %cst_5 = arith.constant 5.96046448E-8 : f32
    %8 = vector.broadcast %cst_5 : f32 to vector<1x128xf32>
    %9 = arith.maximumf %7, %8 : vector<1x128xf32>
    %10 = tpu.reciprocal %9 {approx = true} : vector<1x128xf32> -> vector<1x128xf32>
    %11 = vector.broadcast %10 : vector<1x128xf32> to vector<32x128xf32>
    %12 = arith.mulf %1, %11 : vector<32x128xf32>
    %13 = arith.mulf %12, %12 : vector<32x128xf32>
    %cst_6 = arith.constant dense<0.000000e+00> : vector<128xf32>
    %14 = vector.multi_reduction <add>, %13, %cst_6 [0] : vector<32x128xf32> to vector<128xf32>
    %15 = vector.shape_cast %14 : vector<128xf32> to vector<1x128xf32>
    %16 = math.rsqrt %15 : vector<1x128xf32>
    %17 = vector.broadcast %16 : vector<1x128xf32> to vector<32x128xf32>
    %18 = arith.mulf %12, %17 : vector<32x128xf32>
    %19 = vector.broadcast %2 : vector<32x1xf32> to vector<32x128xf32>
    %20 = arith.mulf %18, %19 : vector<32x128xf32>
    %c0_7 = arith.constant 0 : index
    %c0_8 = arith.constant 0 : index
    %c0_9 = arith.constant 0 : index
    %21 = vector.load %arg4[%c0_7, %c0_8, %c0_9] : memref<1x32x128xf32, #tpu.memory_space<vmem>>, vector<1x32x128xf32>
    %22 = vector.shape_cast %21 : vector<1x32x128xf32> to vector<32x128xf32>
    %23 = vector.shape_cast %20 : vector<32x128xf32> to vector<1x32x128xf32>
    tpu.vector_store %arg4[%c0_7, %c0_8, %c0_9], %23 {strides = array<i32>} : memref<1x32x128xf32, #tpu.memory_space<vmem>>, vector<1x32x128xf32>,
    return
  }
  func.func @transform_0(%arg0: i32, %arg1: i32) -> (i32, i32, i32) {
    %c0_i32 = arith.constant 0 : i32
    %c0_i32_0 = arith.constant 0 : i32
    return %arg0, %c0_i32, %arg1 : i32, i32, i32
  }
  func.func @transform_1(%arg0: i32, %arg1: i32) -> (i32, i32) {
    %c0_i32 = arith.constant 0 : i32
    %c0_i32_0 = arith.constant 0 : i32
    %c0_i32_1 = arith.constant 0 : i32
    return %c0_i32, %c0_i32_0 : i32, i32
  }
  func.func @transform_2(%arg0: i32, %arg1: i32) -> (i32, i32, i32) {
    %c0_i32 = arith.constant 0 : i32
    %c0_i32_0 = arith.constant 0 : i32
    return %arg0, %c0_i32, %arg1 : i32, i32, i32
  }
}

</mosaic_0001>

<llo_original>
// kernel: tpu_custom_call.1
$region0: #{tpu_custom_call.1}
  #allocation0 [shape = 'u32[]', space=smem, size = 0x4, offset = 0x4, fixed_abs, tag = 'smem constant byte address 0x4 - core index']
  #allocation1 [shape = 'u32[144,128]{1,0:T(1,128)}', space=vmem, size = 0x12000, scoped, tag = 'internal scratch']
  %s0 = inlined_call_operand.hbm [shape: f32[2,32,128], index: 0, kind: input, shape index: {}]
  %s1 = inlined_call_operand.vmem [shape: f32[32,1], index: 1, kind: input, shape index: {}]
  %s2 = inlined_call_operand.hbm [shape: f32[2,32,128], index: 2, kind: output, shape index: {}]
  %s3 = sld [smem:[#allocation0]]
  $region45: #{tpu_custom_call.1} parent=0
    _
  %s5 = ssub.s32 1, %s3
  %s6 = scalar_select 0, %s5, %s3
  $region1: #{tpu_custom_call.1} parent=0
    #allocation2 [shape = 'u8[32768]{0}', space=vmem, size = 0x8000, scoped, tag = 'input window, operand 0']
    #allocation3 [shape = 's32[2]{0}', space=sflag, size = 0x8, scoped, tag = 'scoped memory for tpu_custom_call.1']
    #allocation4 [shape = 's32[2]{0}', space=sflag, size = 0x8, scoped, tag = 'scoped memory for tpu_custom_call.1']
    #allocation5 [shape = 'u8[32768]{0}', space=vmem, size = 0x8000, scoped, tag = 'output window, operand 0']
    %7 = vsyncpa [#allocation3], 0
    %s8 = scalar_lea.sflag [#allocation3], 1
    %9 = vsyncpa %s8, 0
    %10 = vsyncpa [#allocation4], 0
    %s11 = scalar_lea.sflag [#allocation4], 1
    %12 = vsyncpa %s11, 0
    loop: start=0, step=1, limit=4
    $region2: #{tpu_custom_call.1} parent=1 // loop_pre_header
      _
    $region3: #{tpu_custom_call.1} parent=1 // loop_header
      %s14 = sphi 0, %s18
      %p15 = scmp.ge.s32.totalorder %s14, 4
      %s21 = sphi 0, %s33
      %s22 = sphi 0, %s29
      %s23 = sphi 0, %s21
      %s24 = sphi 0, %s22
      %s25 = sphi 0, %s23
      %s26 = sphi 0, %s24
      %s38 = sphi 0, %s40
      %s41 = sphi 0, %s38
      %s42 = sphi 0, %s41
      %s58 = sphi 0, %s42
      %s62 = sphi 0, %s62
      %s64 = sphi 0, %s62
      %s65 = sphi 0, %s64
      %s79 = sphi 0, %s65
      %s87 = sphi 0, %s89
      %s90 = sphi 0, %s87
      %s91 = sphi 0, %s90
      %s107 = sphi 0, %s91
    $region4: #{tpu_custom_call.1} parent=1 // loop_header_branch
      %17 = sbr.rel (%p15) target = $region8
    $region5: #{tpu_custom_call.1} parent=1 // loop_body
      %s19 = ssub.s32 %s14, 1
      %s20 = ssub.s32 %s14, 2
      %s27 = sadd.s32 1, %s22
      %p28 = scmp.ge.s32.totalorder %s27, 1
      %s29 = scalar_select %p28, 0, %s27
      %s30 = sadd.s32 1, %s21
      %s31 = scalar_select %p28, %s30, %s21
      %p32 = scmp.ge.s32.totalorder %s31, 2
      %s33 = scalar_select %p32, 0, %s31
      %s34 = ssub.s32 %s21, %s33
      %s35 = ssub.s32 %s22, %s29
      %s36 = sor.u32 %s34, %s35
      %p37 = scmp.eq.s32.totalorder %s36, 0
      %s39 = sadd.s32 %s38, 1
      %s40 = scalar_select %p37, %s38, %s39
      %p43 = pneg %p37
      %p44 = scmp.eq.s32.totalorder %s14, 1
      %p45 = por %p43, %p44
      %p46 = scmp.ne.s32.totalorder %s38, %s41
      %p47 = scmp.eq.s32.totalorder %s14, 0
      %p48 = por %p46, %p47
      %p49 = scmp.ne.s32.totalorder %s38, %s41
      %p50 = scmp.eq.s32.totalorder %s19, 1
      %p51 = por %p49, %p50
      %p52 = scmp.ne.s32.totalorder %s41, %s42
      %p53 = scmp.eq.s32.totalorder %s19, 0
      %p54 = por %p52, %p53
      %p55 = scmp.ne.s32.totalorder %s41, %s42
      %p56 = scmp.eq.s32.totalorder %s20, 1
      %p57 = por %p55, %p56
      %p59 = scmp.ne.s32.totalorder %s42, %s58
      %p60 = scmp.eq.s32.totalorder %s20, 0
      %p61 = por %p59, %p60
      %s63 = sadd.s32 %s62, 1
      %p66 = scmp.eq.s32.totalorder %s14, 1
      %p67 = scmp.ne.s32.totalorder %s62, %s64
      %p68 = scmp.eq.s32.totalorder %s14, 0
      %p69 = por %p67, %p68
      %p70 = scmp.ne.s32.totalorder %s62, %s64
      %p71 = scmp.eq.s32.totalorder %s19, 1
      %p72 = por %p70, %p71
      %p73 = scmp.ne.s32.totalorder %s64, %s65
      %p74 = scmp.eq.s32.totalorder %s19, 0
      %p75 = por %p73, %p74
      %p76 = scmp.ne.s32.totalorder %s64, %s65
      %p77 = scmp.eq.s32.totalorder %s20, 1
      %p78 = por %p76, %p77
      %p80 = scmp.ne.s32.totalorder %s65, %s79
      %p81 = scmp.eq.s32.totalorder %s20, 0
      %p82 = por %p80, %p81
      %s83 = ssub.s32 %s21, %s33
      %s84 = ssub.s32 %s22, %s29
      %s85 = sor.u32 %s83, %s84
      %p86 = scmp.eq.s32.totalorder %s85, 0
      %s88 = sadd.s32 %s87, 1
      %s89 = scalar_select %p86, %s87, %s88
      %p92 = pneg %p86
      %p93 = scmp.eq.s32.totalorder %s14, 1
      %p94 = por %p92, %p93
      %p95 = scmp.ne.s32.totalorder %s87, %s90
      %p96 = scmp.eq.s32.totalorder %s14, 0
      %p97 = por %p95, %p96
      %p98 = scmp.ne.s32.totalorder %s87, %s90
      %p99 = scmp.eq.s32.totalorder %s19, 1
      %p100 = por %p98, %p99
      %p101 = scmp.ne.s32.totalorder %s90, %s91
      %p102 = scmp.eq.s32.totalorder %s19, 0
      %p103 = por %p101, %p102
      %p104 = scmp.ne.s32.totalorder %s90, %s91
      %p105 = scmp.eq.s32.totalorder %s20, 1
      %p106 = por %p104, %p105
      %p108 = scmp.ne.s32.totalorder %s91, %s107
      %p109 = scmp.eq.s32.totalorder %s20, 0
      %p110 = por %p108, %p109
      %p111 = scmp.le.s32.totalorder 1, %s14
      %p112 = scmp.lt.s32.totalorder %s14, 3
      %p113 = pnand %p111, %p112
      %p114 = pneg %p113
      // Predicated region
      $region9: #{tpu_custom_call.1} parent=5 // pred_check
        _
      $region10: #{tpu_custom_call.1} parent=5 // pred_check_branch
        %116 = sbr.rel (%p113) target = $region12
      $region11: #{tpu_custom_call.1} parent=5 // pred_region
        %s117 = ssub.s32 %s14, 1
        // Predicated region
        $region13: #{tpu_custom_call.1} parent=11 // pred_check
          %p118 = pneg %p75
        $region14: #{tpu_custom_call.1} parent=11 // pred_check_branch
          %120 = sbr.rel (%p118) target = $region16
        $region15: #{tpu_custom_call.1} parent=11 // pred_region
          _
        $region16: #{tpu_custom_call.1} parent=11 // pred_fallthru
          _
      $region12: #{tpu_custom_call.1} parent=5 // pred_fallthru
        _
      %p121 = scmp.lt.s32.totalorder %s14, 2
      // Predicated region
      $region17: #{tpu_custom_call.1} parent=5 // pred_check
        %p122 = pneg %p121
      $region18: #{tpu_custom_call.1} parent=5 // pred_check_branch
        %124 = sbr.rel (%p122) target = $region20
      $region19: #{tpu_custom_call.1} parent=5 // pred_region
        // Predicated region
        $region21: #{tpu_custom_call.1} parent=19 // pred_check
          %p125 = pneg %p48
        $region22: #{tpu_custom_call.1} parent=19 // pred_check_branch
          %127 = sbr.rel (%p125) target = $region24
        $region23: #{tpu_custom_call.1} parent=19 // pred_region
          %s128 = sand.u32 %s38, 1
          %s129 = scalar_lea.sflag [#allocation3], %s128
          %s130 = sand.u32 %s38, 1
          %s131 = smul.addr %s130, 32
          %s132 = scalar_lea.vmem [#allocation2], %s131
          %s134 = ssub.s32 512, 512
          %135 = vsyncadd %s129, %s134
          %s136 = smul.addr %s21, 4
          %s137 = sadd.s32 %s22, %s136
          %s138 = smul.addr %s137, 128
          %s139 = scalar_lea.hbm %s0, %s138
          %s140 = sshll.u32 %s132, 4
          %s141 = int_to_ptr.vmem [resolvable:$true] %s140
          %146 = dma.hbm_to_vmem [thread:$0]  %s139, 512, %s141, %s129, 128, 128, 8
        $region24: #{tpu_custom_call.1} parent=19 // pred_fallthru
          _
      $region20: #{tpu_custom_call.1} parent=5 // pred_fallthru
        _
      %p147 = scmp.le.s32.totalorder 1, %s14
      %p148 = scmp.lt.s32.totalorder %s14, 3
      %p149 = pnand %p147, %p148
      %p150 = pneg %p149
      // Predicated region
      $region25: #{tpu_custom_call.1} parent=5 // pred_check
        _
      $region26: #{tpu_custom_call.1} parent=5 // pred_check_branch
        %152 = sbr.rel (%p149) target = $region28
      $region27: #{tpu_custom_call.1} parent=5 // pred_region
        %s153 = ssub.s32 %s14, 1
        %s154 = sand.u32 %s41, 1
        %s155 = scalar_lea.sflag [#allocation3], %s154
        %s156 = sand.u32 %s41, 1
        %s157 = smul.addr %s156, 32
        %s158 = scalar_lea.vmem [#allocation2], %s157
        // Predicated region
        $region29: #{tpu_custom_call.1} parent=27 // pred_check
          %p159 = pneg %p54
        $region30: #{tpu_custom_call.1} parent=27 // pred_check_branch
          %161 = sbr.rel (%p159) target = $region32
        $region31: #{tpu_custom_call.1} parent=27 // pred_region
          %162 = dma.done %s155, 512
        $region32: #{tpu_custom_call.1} parent=27 // pred_fallthru
          _
        %s163 = sand.u32 %s41, 1
        %s164 = scalar_lea.sflag [#allocation3], %s163
        %s165 = sand.u32 %s41, 1
        %s166 = smul.addr %s165, 32
        %s167 = scalar_lea.vmem [#allocation2], %s166
        %p168 = pneg %p54
        %p169 = pneg %p51
        %p170 = pneg %p75
        %p171 = pneg %p72
        %p172 = pneg %p103
        %p173 = pneg %p100
        %s174 = sand.u32 %s90, 1
        %s175 = scalar_lea.sflag [#allocation4], %s174
        %s176 = sand.u32 %s90, 1
        %s177 = smul.addr %s176, 32
        %s178 = scalar_lea.vmem [#allocation5], %s177
        %v179 = vld [vmem:[%s158] sm:$0xff]
        %v180 = vld [vmem:[%s158 + $0x8] sm:$0xff]
        %v181 = vld [vmem:[%s158 + $0x10] sm:$0xff]
        %v182 = vld [vmem:[%s158 + $0x18] sm:$0xff]
        %v183 = vld [vmem:[%s1] sm:$0xff]
        %v184 = vld [vmem:[%s1 + $0x8] sm:$0xff]
        %v185 = vld [vmem:[%s1 + $0x10] sm:$0xff]
        %v186 = vld [vmem:[%s1 + $0x18] sm:$0xff]
        %v187 = vand.u32 2147483647, %v179
        %v188 = vand.u32 2147483647, %v180
        %v189 = vand.u32 2147483647, %v181
        %v190 = vand.u32 2147483647, %v182
        %v191 = vmax.f32 %v187, %v188
        %v192 = vmax.f32 %v189, %v190
        %v193 = vmax.f32 %v191, %v192
        %v194 = vrot.slane %v193, 4
        %v195 = vmax.f32 %v193, %v194
        %v196 = vrot.slane %v195, 2
        %v197 = vmax.f32 %v195, %v196
        %v198 = vrot.slane %v197, 1
        %v199 = vmax.f32 %v197, %v198
        %v200 = vmax.f32 %v199, 5.9604645e-08
        %v201 = vrcp.pop %v200
        %v202 = vmul.f32 %v179, %v201
        %v203 = vmul.f32 %v180, %v201
        %v204 = vmul.f32 %v181, %v201
        %v205 = vmul.f32 %v182, %v201
        %v206 = vmul.f32 %v202, %v202
        %v207 = vmul.f32 %v203, %v203
        %v208 = vmul.f32 %v204, %v204
        %v209 = vmul.f32 %v205, %v205
        %v210 = vadd.f32 %v206, %v207
        %v211 = vadd.f32 %v210, %v208
        %v212 = vadd.f32 %v211, %v209
        %v213 = vrot.slane %v212, 4
        %v214 = vadd.f32 %v212, %v213
        %v215 = vrot.slane %v214, 2
        %v216 = vadd.f32 %v214, %v215
        %v217 = vrot.slane %v216, 1
        %v218 = vadd.f32 %v216, %v217
        %v219 = vrsqrt.pop %v218
        %v220 = vmul.f32 %v202, %v219
        %v221 = vmul.f32 %v203, %v219
        %v222 = vmul.f32 %v204, %v219
        %v223 = vmul.f32 %v205, %v219
        %225 = vset.pattern.permute.xlu0 0
        %226 = vperm.xlu0 %225, %v183
        %v227 = vpop.permute.xlu0 %226
        %230 = vset.pattern.permute.xlu0 0
        %231 = vperm.xlu0 %230, %v184
        %v232 = vpop.permute.xlu0 %231
        %235 = vset.pattern.permute.xlu0 0
        %236 = vperm.xlu0 %235, %v185
        %v237 = vpop.permute.xlu0 %236
        %240 = vset.pattern.permute.xlu0 0
        %241 = vperm.xlu0 %240, %v186
        %v242 = vpop.permute.xlu0 %241
        %v244 = vmul.f32 %v220, %v227
        %v245 = vmul.f32 %v221, %v232
        %v246 = vmul.f32 %v222, %v237
        %v247 = vmul.f32 %v223, %v242
        %248 = vst [vmem:[%s178] sm:$0xff] %v244
        %249 = vst [vmem:[%s178 + $0x8] sm:$0xff] %v245
        %250 = vst [vmem:[%s178 + $0x10] sm:$0xff] %v246
        %251 = vst [vmem:[%s178 + $0x18] sm:$0xff] %v247
        %s252 = sand.u32 %s90, 1
        %s253 = scalar_lea.sflag [#allocation4], %s252
        %s254 = sand.u32 %s90, 1
        %s255 = smul.addr %s254, 32
        %s256 = scalar_lea.vmem [#allocation5], %s255
        // Predicated region
        $region33: #{tpu_custom_call.1} parent=27 // pred_check
          %p257 = pneg %p100
        $region34: #{tpu_custom_call.1} parent=27 // pred_check_branch
          %259 = sbr.rel (%p257) target = $region36
        $region35: #{tpu_custom_call.1} parent=27 // pred_region
          %s261 = ssub.s32 512, 512
          %262 = vsyncadd %s253, %s261
          %s263 = smul.addr %s23, 4
          %s264 = sadd.s32 %s24, %s263
          %s265 = smul.addr %s264, 128
          %s266 = scalar_lea.hbm %s2, %s265
          %s267 = sshll.u32 %s256, 4
          %s268 = int_to_ptr.vmem [resolvable:$true] %s267
          %273 = dma.vmem_to_hbm [thread:$0]  %s268, 512, %s266, %s253, 128, 128, 8
        $region36: #{tpu_custom_call.1} parent=27 // pred_fallthru
          _
      $region28: #{tpu_custom_call.1} parent=5 // pred_fallthru
        _
      %p274 = scmp.le.s32.totalorder 2, %s14
      // Predicated region
      $region37: #{tpu_custom_call.1} parent=5 // pred_check
        %p275 = pneg %p274
      $region38: #{tpu_custom_call.1} parent=5 // pred_check_branch
        %277 = sbr.rel (%p275) target = $region40
      $region39: #{tpu_custom_call.1} parent=5 // pred_region
        %s278 = ssub.s32 %s14, 2
        // Predicated region
        $region41: #{tpu_custom_call.1} parent=39 // pred_check
          %p279 = pneg %p106
        $region42: #{tpu_custom_call.1} parent=39 // pred_check_branch
          %281 = sbr.rel (%p279) target = $region44
        $region43: #{tpu_custom_call.1} parent=39 // pred_region
          %s282 = sand.u32 %s91, 1
          %s283 = scalar_lea.sflag [#allocation4], %s282
          %s284 = sand.u32 %s91, 1
          %s285 = smul.addr %s284, 32
          %s286 = scalar_lea.vmem [#allocation5], %s285
          %287 = dma.done %s283, 512
        $region44: #{tpu_custom_call.1} parent=39 // pred_fallthru
          _
      $region40: #{tpu_custom_call.1} parent=5 // pred_fallthru
        _
    $region6: #{tpu_custom_call.1} parent=1 // loop_footer
      %s18 = sadd.s32 1, %s14
    $region7: #{tpu_custom_call.1} parent=1 // loop_footer_branch
      %13 = sbr.rel target = $region3
    $region8: #{tpu_custom_call.1} parent=1 // loop_exit
      _
    %288 = vsyncpa [#allocation3], 1
    %s289 = scalar_lea.sflag [#allocation3], 1
    %290 = vsyncpa %s289, 1
    %291 = vsyncpa [#allocation4], 1
    %s292 = scalar_lea.sflag [#allocation4], 1
    %293 = vsyncpa %s292, 1

</llo_original>
